<compile_context>
chip_gen: v5e
topology: v5e:2x2
jax: 0.10.0
libtpu: 0.0.40
codegen_flags: <defaults>
</compile_context>

<pallas_src>
import numpy as np
import jax
import jax.numpy as jnp
from jax.experimental import pallas as pl
from jax.experimental.pallas import tpu as pltpu

# --- model hyperparameters (cmd_args equivalents, small synthetic sizes) ---
FEAT_DIM = 8        # cmd_args.feat_dim
LATENT_DIM = 128    # cmd_args.latent_dim (lane-dense: multiple of 128)
OUT_DIM = 128       # cmd_args.out_dim    (lane-dense: multiple of 128)
MAX_LV = 3          # cmd_args.max_lv
NODES_PER_GRAPH = 8
NUM_GRAPHS = 2
N_TOTAL = NODES_PER_GRAPH * NUM_GRAPHS


def s2v_mean_field_kernel(feat_ref, adj_ref, wn_ref, bn_ref, wc_ref, bc_ref,
                          wo_ref, bo_ref, out_ref):
    """Mean-field embedding for ONE graph of the batch (one grid step)."""
    feat = feat_ref[0]                     # (n, F)  bf16
    adj = adj_ref[0]                       # (n, n)  bf16  (this graph's block only)

    # Loop-invariant weight loads, hoisted (read once per grid step).
    wn = wn_ref[...]                       # (F, L)  bf16
    wc = wc_ref[...]                       # (L, L)  bf16
    wo = wo_ref[...]                       # (L, O)  bf16

    # input_node_linear + input_message (f32 accumulation on the MXU).
    h0 = jnp.dot(feat, wn, preferred_element_type=jnp.float32) + bn_ref[...]
    cur = jnp.maximum(h0, 0.0)             # input_potential = relu(input_message)

    # Hoisted loop-invariant residual term: h0 + conv bias (broadcast once).
    h0_plus_bc = h0 + bc_ref[...]          # (n, L) f32

    # Mean-field message-passing levels (fixed trip count -> unrolled).
    for _ in range(MAX_LV):
        n2npool = jnp.dot(adj, cur.astype(jnp.bfloat16),
                          preferred_element_type=jnp.float32)          # gnn_spmm(n2n_sp, cur)
        node_linear = jnp.dot(n2npool.astype(jnp.bfloat16), wc,
                              preferred_element_type=jnp.float32)       # conv_params
        cur = jnp.maximum(node_linear + h0_plus_bc, 0.0)                # relu(merged_linear)

    # out_params + relu.
    o = jnp.maximum(
        jnp.dot(cur.astype(jnp.bfloat16), wo,
                preferred_element_type=jnp.float32) + bo_ref[...],
        0.0)                                                            # (n, O) f32

    # Per-graph sum pooling (subg_sp is a 0/1 indicator -> plain row-sum) + relu.
    pooled = jnp.sum(o, axis=0, keepdims=True)                          # (1, O) f32
    out_ref[...] = jnp.maximum(pooled, 0.0)


def _cost_estimate(G, n, F, L, O):
    per_graph_flops = (2 * n * F * L
                       + MAX_LV * (2 * n * n * L + 2 * n * L * L)
                       + 2 * n * L * O
                       + n * O)
    bytes_accessed = (G * n * F * 2 + G * n * n * 2          # bf16 feat + adj blocks
                      + F * L * 2 + L * L * 2 + L * O * 2    # bf16 weights
                      + (2 * L + O) * 4                      # f32 biases
                      + G * O * 4)                           # f32 output
    return pl.CostEstimate(flops=G * per_graph_flops,
                           transcendentals=0,
                           bytes_accessed=bytes_accessed)


def graph_ebd_forward(node_feat_blocks, adj_blocks, params):
    """GraphEbd.forward for a batch stored as per-graph blocks.

    node_feat_blocks : [G, n, F]   node features (graph-major)
    adj_blocks       : [G, n, n]   each graph's own adjacency block
                       (the batched n2n_sp matrix is block-diagonal, so only
                        the diagonal blocks are ever materialized / DMA'd)
    """
    wn, bn, wc, bc, wo, bo = params
    G, n, F = node_feat_blocks.shape
    L = wc.shape[0]
    O = wo.shape[1]

    # bf16 MXU inputs (adjacency is 0/1 -> exact); f32 accumulation in-kernel.
    feat_bf = node_feat_blocks.astype(jnp.bfloat16)
    adj_bf = adj_blocks.astype(jnp.bfloat16)
    wn_bf = wn.astype(jnp.bfloat16)
    wc_bf = wc.astype(jnp.bfloat16)
    wo_bf = wo.astype(jnp.bfloat16)

    grid_spec = pltpu.PrefetchScalarGridSpec(
        num_scalar_prefetch=0,
        grid=(G,),
        in_specs=[
            pl.BlockSpec((1, n, F), lambda g: (g, 0, 0)),   # this graph's features
            pl.BlockSpec((1, n, n), lambda g: (g, 0, 0)),   # this graph's adj block
            pl.BlockSpec((F, L), lambda g: (0, 0)),         # w_n2l  (resident)
            pl.BlockSpec((1, L), lambda g: (0, 0)),         # b_n2l  (resident)
            pl.BlockSpec((L, L), lambda g: (0, 0)),         # conv_params W (resident)
            pl.BlockSpec((1, L), lambda g: (0, 0)),         # conv_params b (resident)
            pl.BlockSpec((L, O), lambda g: (0, 0)),         # out_params W (resident)
            pl.BlockSpec((1, O), lambda g: (0, 0)),         # out_params b (resident)
        ],
        # Lane-dense output slab: each grid step writes its own aligned
        # 128-lane chunk of a (1, G*O) row (no masked partial stores).
        out_specs=pl.BlockSpec((1, O), lambda g: (0, g)),
    )

    out = pl.pallas_call(
        s2v_mean_field_kernel,
        out_shape=jax.ShapeDtypeStruct((1, G * O), jnp.float32),
        grid_spec=grid_spec,
        compiler_params=pltpu.CompilerParams(
            dimension_semantics=("parallel",)),             # shard graphs over TCs (v7x)
        cost_estimate=_cost_estimate(G, n, F, L, O),
    )(feat_bf, adj_bf, wn_bf, bn, wc_bf, bc, wo_bf, bo)

    return out.reshape(G, O)


def reference_forward(node_feat, adj_dense, subg, params, bf16_matmul=False):
    """Pure-JAX dense-batch reference (matches PyTorch EmbedMeanField.mean_field)."""
    wn, bn, wc, bc, wo, bo = params
    in_dt = jnp.bfloat16 if bf16_matmul else jnp.float32

    def mm(a, b):
        return jnp.dot(a.astype(in_dt), b.astype(in_dt),
                       preferred_element_type=jnp.float32)

    h0 = mm(node_feat, wn) + bn
    cur = jnp.maximum(h0, 0.0)
    for _ in range(MAX_LV):
        cur = jnp.maximum(mm(mm(adj_dense, cur), wc) + bc + h0, 0.0)
    o = jnp.maximum(mm(cur, wo) + bo, 0.0)
    # Pooling stays f32 (subg is a 0/1 indicator), as in the kernel.
    return jnp.maximum(jnp.dot(subg, o, preferred_element_type=jnp.float32), 0.0)


def make_params(key):
    """Deterministic parameter init (shapes from EmbedMeanField.__init__)."""
    k1, k2, k3, k4, k5, k6 = jax.random.split(key, 6)
    wn = jax.random.normal(k1, (FEAT_DIM, LATENT_DIM), jnp.float32) * 0.1    # w_n2l (transposed)
    bn = jax.random.normal(k2, (1, LATENT_DIM), jnp.float32) * 0.05
    wc = jax.random.normal(k3, (LATENT_DIM, LATENT_DIM), jnp.float32) * 0.1  # conv_params
    bc = jax.random.normal(k4, (1, LATENT_DIM), jnp.float32) * 0.05
    wo = jax.random.normal(k5, (LATENT_DIM, OUT_DIM), jnp.float32) * 0.1     # out_params
    bo = jax.random.normal(k6, (1, OUT_DIM), jnp.float32) * 0.05
    return wn, bn, wc, bc, wo, bo


def make_batch(key):
    """Synthetic batch: per-graph node features [G, n, F] and per-graph
    symmetric 0/1 adjacency blocks [G, n, n] (no self loops)."""
    node_feat = jax.random.normal(key, (NUM_GRAPHS, NODES_PER_GRAPH, FEAT_DIM),
                                  jnp.float32)

    rng = np.random.default_rng(0)
    adj_blocks = np.zeros((NUM_GRAPHS, NODES_PER_GRAPH, NODES_PER_GRAPH),
                          dtype=np.float32)
    for g in range(NUM_GRAPHS):
        blk = (rng.random((NODES_PER_GRAPH, NODES_PER_GRAPH)) < 0.4).astype(np.float32)
        blk = np.triu(blk, 1)
        adj_blocks[g] = blk + blk.T

    return node_feat, jnp.asarray(adj_blocks)


def dense_batch_views(node_feat_blocks, adj_blocks):
    """Build the original dense batched views (n2n_sp as block-diag, subg_sp
    as the per-graph sum-pooling indicator) for the reference check."""
    node_feat_flat = np.asarray(node_feat_blocks).reshape(N_TOTAL, FEAT_DIM)

    adj_dense = np.zeros((N_TOTAL, N_TOTAL), dtype=np.float32)
    subg = np.zeros((NUM_GRAPHS, N_TOTAL), dtype=np.float32)
    for g in range(NUM_GRAPHS):
        s = g * NODES_PER_GRAPH
        e = s + NODES_PER_GRAPH
        adj_dense[s:e, s:e] = np.asarray(adj_blocks[g])
        subg[g, s:e] = 1.0
    return (jnp.asarray(node_feat_flat), jnp.asarray(adj_dense), jnp.asarray(subg))


if __name__ == "__main__":
    key = jax.random.PRNGKey(0)
    kp, kb = jax.random.split(key)
    params = make_params(kp)
    node_feat_blocks, adj_blocks = make_batch(kb)

    embed = graph_ebd_forward(node_feat_blocks, adj_blocks, params)
    embed = jax.block_until_ready(embed)
    assert embed.shape == (NUM_GRAPHS, OUT_DIM)

    node_feat_flat, adj_dense, subg = dense_batch_views(node_feat_blocks, adj_blocks)

    # Matched-precision reference (same bf16 matmul inputs, f32 accumulation).
    ref_matched = reference_forward(node_feat_flat, adj_dense, subg, params,
                                    bf16_matmul=True)
    np.testing.assert_allclose(np.asarray(embed), np.asarray(ref_matched),
                               rtol=1e-2, atol=1e-2)

    # Full-f32 reference (PyTorch semantics); looser tolerance covers the
    # deliberate bf16-MXU-input precision trade.
    ref_f32 = reference_forward(node_feat_flat, adj_dense, subg, params,
                                bf16_matmul=False)
    np.testing.assert_allclose(np.asarray(embed), np.asarray(ref_f32),
                               rtol=1e-1, atol=1e-1)

    print("KERNEL_OK")
</pallas_src>

<mosaic_0001>
module attributes {stable_mosaic.version = 11 : i64} {
  func.func @s2v_mean_field_kernel(%arg0: i32, %arg1: memref<1x8x8xbf16, #tpu.memory_space<vmem>>, %arg2: memref<1x8x8xbf16, #tpu.memory_space<vmem>>, %arg3: memref<8x128xbf16, #tpu.memory_space<vmem>>, %arg4: memref<1x128xf32, #tpu.memory_space<vmem>>, %arg5: memref<128x128xbf16, #tpu.memory_space<vmem>>, %arg6: memref<1x128xf32, #tpu.memory_space<vmem>>, %arg7: memref<128x128xbf16, #tpu.memory_space<vmem>>, %arg8: memref<1x128xf32, #tpu.memory_space<vmem>>, %arg9: memref<1x128xf32, #tpu.memory_space<vmem>>) attributes {dimension_semantics = [#tpu.dimension_semantics<parallel>], iteration_bounds = array<i64: 2>, scalar_prefetch = 0 : i64, scratch_operands = 0 : i64, tpu.core_type = #tpu.core_type<tc>, window_params = [{transform_indices = @transform_0, window_bounds = array<i64: 1, 8, 8>}, {transform_indices = @transform_1, window_bounds = array<i64: 1, 8, 8>}, {pipeline_mode = #tpu.pipeline_mode<synchronous>, transform_indices = @transform_2, window_bounds = array<i64: 8, 128>}, {pipeline_mode = #tpu.pipeline_mode<synchronous>, transform_indices = @transform_3, window_bounds = array<i64: 1, 128>}, {pipeline_mode = #tpu.pipeline_mode<synchronous>, transform_indices = @transform_4, window_bounds = array<i64: 128, 128>}, {pipeline_mode = #tpu.pipeline_mode<synchronous>, transform_indices = @transform_5, window_bounds = array<i64: 1, 128>}, {pipeline_mode = #tpu.pipeline_mode<synchronous>, transform_indices = @transform_6, window_bounds = array<i64: 128, 128>}, {pipeline_mode = #tpu.pipeline_mode<synchronous>, transform_indices = @transform_7, window_bounds = array<i64: 1, 128>}, {transform_indices = @transform_8, window_bounds = array<i64: 1, 128>}]} {
    %c0 = arith.constant 0 : index
    %c0_0 = arith.constant 0 : index
    %c0_1 = arith.constant 0 : index
    %0 = vector.load %arg1[%c0, %c0_0, %c0_1] : memref<1x8x8xbf16, #tpu.memory_space<vmem>>, vector<1x8x8xbf16>
    %1 = vector.shape_cast %0 : vector<1x8x8xbf16> to vector<8x8xbf16>
    %c0_2 = arith.constant 0 : index
    %c0_3 = arith.constant 0 : index
    %c0_4 = arith.constant 0 : index
    %2 = vector.load %arg2[%c0_2, %c0_3, %c0_4] : memref<1x8x8xbf16, #tpu.memory_space<vmem>>, vector<1x8x8xbf16>
    %3 = vector.shape_cast %2 : vector<1x8x8xbf16> to vector<8x8xbf16>
    %c0_5 = arith.constant 0 : index
    %c0_6 = arith.constant 0 : index
    %4 = vector.load %arg3[%c0_5, %c0_6] : memref<8x128xbf16, #tpu.memory_space<vmem>>, vector<8x128xbf16>
    %c0_7 = arith.constant 0 : index
    %c0_8 = arith.constant 0 : index
    %5 = vector.load %arg5[%c0_7, %c0_8] : memref<128x128xbf16, #tpu.memory_space<vmem>>, vector<128x128xbf16>
    %c0_9 = arith.constant 0 : index
    %c0_10 = arith.constant 0 : index
    %6 = vector.load %arg7[%c0_9, %c0_10] : memref<128x128xbf16, #tpu.memory_space<vmem>>, vector<128x128xbf16>
    %cst = arith.constant dense<0.000000e+00> : vector<8x128xf32>
    %7 = tpu.matmul %1, %4, %cst {dimension_numbers = #tpu.dot_dimension_numbers<[1], [0], [0], [1], [0, 0, 1, 1], [], []>} : vector<8x8xbf16>, vector<8x128xbf16>, vector<8x128xf32> -> vector<8x128xf32>
    %c0_11 = arith.constant 0 : index
    %c0_12 = arith.constant 0 : index
    %8 = vector.load %arg4[%c0_11, %c0_12] : memref<1x128xf32, #tpu.memory_space<vmem>>, vector<1x128xf32>
    %9 = vector.broadcast %8 : vector<1x128xf32> to vector<8x128xf32>
    %10 = arith.addf %7, %9 : vector<8x128xf32>
    %cst_13 = arith.constant 0.000000e+00 : f32
    %11 = vector.broadcast %cst_13 : f32 to vector<8x128xf32>
    %12 = arith.maximumf %10, %11 : vector<8x128xf32>
    %c0_14 = arith.constant 0 : index
    %c0_15 = arith.constant 0 : index
    %13 = vector.load %arg6[%c0_14, %c0_15] : memref<1x128xf32, #tpu.memory_space<vmem>>, vector<1x128xf32>
    %14 = vector.broadcast %13 : vector<1x128xf32> to vector<8x128xf32>
    %15 = arith.addf %10, %14 : vector<8x128xf32>
    %16 = arith.truncf %12 : vector<8x128xf32> to vector<8x128xbf16>
    %cst_16 = arith.constant dense<0.000000e+00> : vector<8x128xf32>
    %17 = tpu.matmul %3, %16, %cst_16 {dimension_numbers = #tpu.dot_dimension_numbers<[1], [0], [0], [1], [0, 0, 1, 1], [], []>} : vector<8x8xbf16>, vector<8x128xbf16>, vector<8x128xf32> -> vector<8x128xf32>
    %18 = arith.truncf %17 : vector<8x128xf32> to vector<8x128xbf16>
    %cst_17 = arith.constant dense<0.000000e+00> : vector<8x128xf32>
    %19 = tpu.matmul %18, %5, %cst_17 {dimension_numbers = #tpu.dot_dimension_numbers<[1], [0], [0], [1], [0, 0, 1, 1], [], []>} : vector<8x128xbf16>, vector<128x128xbf16>, vector<8x128xf32> -> vector<8x128xf32>
    %20 = arith.addf %19, %15 : vector<8x128xf32>
    %cst_18 = arith.constant 0.000000e+00 : f32
    %21 = vector.broadcast %cst_18 : f32 to vector<8x128xf32>
    %22 = arith.maximumf %20, %21 : vector<8x128xf32>
    %23 = arith.truncf %22 : vector<8x128xf32> to vector<8x128xbf16>
    %cst_19 = arith.constant dense<0.000000e+00> : vector<8x128xf32>
    %24 = tpu.matmul %3, %23, %cst_19 {dimension_numbers = #tpu.dot_dimension_numbers<[1], [0], [0], [1], [0, 0, 1, 1], [], []>} : vector<8x8xbf16>, vector<8x128xbf16>, vector<8x128xf32> -> vector<8x128xf32>
    %25 = arith.truncf %24 : vector<8x128xf32> to vector<8x128xbf16>
    %cst_20 = arith.constant dense<0.000000e+00> : vector<8x128xf32>
    %26 = tpu.matmul %25, %5, %cst_20 {dimension_numbers = #tpu.dot_dimension_numbers<[1], [0], [0], [1], [0, 0, 1, 1], [], []>} : vector<8x128xbf16>, vector<128x128xbf16>, vector<8x128xf32> -> vector<8x128xf32>
    %27 = arith.addf %26, %15 : vector<8x128xf32>
    %cst_21 = arith.constant 0.000000e+00 : f32
    %28 = vector.broadcast %cst_21 : f32 to vector<8x128xf32>
    %29 = arith.maximumf %27, %28 : vector<8x128xf32>
    %30 = arith.truncf %29 : vector<8x128xf32> to vector<8x128xbf16>
    %cst_22 = arith.constant dense<0.000000e+00> : vector<8x128xf32>
    %31 = tpu.matmul %3, %30, %cst_22 {dimension_numbers = #tpu.dot_dimension_numbers<[1], [0], [0], [1], [0, 0, 1, 1], [], []>} : vector<8x8xbf16>, vector<8x128xbf16>, vector<8x128xf32> -> vector<8x128xf32>
    %32 = arith.truncf %31 : vector<8x128xf32> to vector<8x128xbf16>
    %cst_23 = arith.constant dense<0.000000e+00> : vector<8x128xf32>
    %33 = tpu.matmul %32, %5, %cst_23 {dimension_numbers = #tpu.dot_dimension_numbers<[1], [0], [0], [1], [0, 0, 1, 1], [], []>} : vector<8x128xbf16>, vector<128x128xbf16>, vector<8x128xf32> -> vector<8x128xf32>
    %34 = arith.addf %33, %15 : vector<8x128xf32>
    %cst_24 = arith.constant 0.000000e+00 : f32
    %35 = vector.broadcast %cst_24 : f32 to vector<8x128xf32>
    %36 = arith.maximumf %34, %35 : vector<8x128xf32>
    %37 = arith.truncf %36 : vector<8x128xf32> to vector<8x128xbf16>
    %cst_25 = arith.constant dense<0.000000e+00> : vector<8x128xf32>
    %38 = tpu.matmul %37, %6, %cst_25 {dimension_numbers = #tpu.dot_dimension_numbers<[1], [0], [0], [1], [0, 0, 1, 1], [], []>} : vector<8x128xbf16>, vector<128x128xbf16>, vector<8x128xf32> -> vector<8x128xf32>
    %c0_26 = arith.constant 0 : index
    %c0_27 = arith.constant 0 : index
    %39 = vector.load %arg8[%c0_26, %c0_27] : memref<1x128xf32, #tpu.memory_space<vmem>>, vector<1x128xf32>
    %40 = vector.broadcast %39 : vector<1x128xf32> to vector<8x128xf32>
    %41 = arith.addf %38, %40 : vector<8x128xf32>
    %cst_28 = arith.constant 0.000000e+00 : f32
    %42 = vector.broadcast %cst_28 : f32 to vector<8x128xf32>
    %43 = arith.maximumf %41, %42 : vector<8x128xf32>
    %cst_29 = arith.constant dense<0.000000e+00> : vector<128xf32>
    %44 = vector.multi_reduction <add>, %43, %cst_29 [0] : vector<8x128xf32> to vector<128xf32>
    %45 = vector.shape_cast %44 : vector<128xf32> to vector<1x128xf32>
    %cst_30 = arith.constant 0.000000e+00 : f32
    %46 = vector.broadcast %cst_30 : f32 to vector<1x128xf32>
    %47 = arith.maximumf %45, %46 : vector<1x128xf32>
    %c0_31 = arith.constant 0 : index
    %c0_32 = arith.constant 0 : index
    %48 = vector.load %arg9[%c0_31, %c0_32] : memref<1x128xf32, #tpu.memory_space<vmem>>, vector<1x128xf32>
    tpu.vector_store %arg9[%c0_31, %c0_32], %47 {strides = array<i32>} : memref<1x128xf32, #tpu.memory_space<vmem>>, vector<1x128xf32>,
    return
  }
  func.func @transform_0(%arg0: i32) -> (i32, i32, i32) {
    %c0_i32 = arith.constant 0 : i32
    %c0_i32_0 = arith.constant 0 : i32
    %c0_i32_1 = arith.constant 0 : i32
    return %arg0, %c0_i32, %c0_i32_0 : i32, i32, i32
  }
  func.func @transform_1(%arg0: i32) -> (i32, i32, i32) {
    %c0_i32 = arith.constant 0 : i32
    %c0_i32_0 = arith.constant 0 : i32
    %c0_i32_1 = arith.constant 0 : i32
    return %arg0, %c0_i32, %c0_i32_0 : i32, i32, i32
  }
  func.func @transform_2(%arg0: i32) -> (i32, i32) {
    %c0_i32 = arith.constant 0 : i32
    %c0_i32_0 = arith.constant 0 : i32
    %c0_i32_1 = arith.constant 0 : i32
    return %c0_i32, %c0_i32_0 : i32, i32
  }
  func.func @transform_3(%arg0: i32) -> (i32, i32) {
    %c0_i32 = arith.constant 0 : i32
    %c0_i32_0 = arith.constant 0 : i32
    %c0_i32_1 = arith.constant 0 : i32
    return %c0_i32, %c0_i32_0 : i32, i32
  }
  func.func @transform_4(%arg0: i32) -> (i32, i32) {
    %c0_i32 = arith.constant 0 : i32
    %c0_i32_0 = arith.constant 0 : i32
    %c0_i32_1 = arith.constant 0 : i32
    return %c0_i32, %c0_i32_0 : i32, i32
  }
  func.func @transform_5(%arg0: i32) -> (i32, i32) {
    %c0_i32 = arith.constant 0 : i32
    %c0_i32_0 = arith.constant 0 : i32
    %c0_i32_1 = arith.constant 0 : i32
    return %c0_i32, %c0_i32_0 : i32, i32
  }
  func.func @transform_6(%arg0: i32) -> (i32, i32) {
    %c0_i32 = arith.constant 0 : i32
    %c0_i32_0 = arith.constant 0 : i32
    %c0_i32_1 = arith.constant 0 : i32
    return %c0_i32, %c0_i32_0 : i32, i32
  }
  func.func @transform_7(%arg0: i32) -> (i32, i32) {
    %c0_i32 = arith.constant 0 : i32
    %c0_i32_0 = arith.constant 0 : i32
    %c0_i32_1 = arith.constant 0 : i32
    return %c0_i32, %c0_i32_0 : i32, i32
  }
  func.func @transform_8(%arg0: i32) -> (i32, i32) {
    %c0_i32 = arith.constant 0 : i32
    %c0_i32_0 = arith.constant 0 : i32
    return %c0_i32, %arg0 : i32, i32
  }
}

</mosaic_0001>

<llo_original>
// kernel: tpu_custom_call.1
$region0: #{tpu_custom_call.1}
  #allocation0 [shape = 'u32[]', space=smem, size = 0x4, offset = 0x4, fixed_abs, tag = 'smem constant byte address 0x4 - core index']
  #allocation1 [shape = 'u32[72,128]{1,0:T(1,128)}', space=vmem, size = 0x9000, scoped, tag = 'internal scratch']
  %s0 = inlined_call_operand.hbm [shape: bf16[2,8,8], index: 0, kind: input, shape index: {}]
  %s1 = inlined_call_operand.hbm [shape: bf16[2,8,8], index: 1, kind: input, shape index: {}]
  %s2 = inlined_call_operand.hbm [shape: bf16[8,128], index: 2, kind: input, shape index: {}]
  %s3 = inlined_call_operand.vmem [shape: f32[1,128], index: 3, kind: input, shape index: {}]
  %s4 = inlined_call_operand.hbm [shape: bf16[128,128], index: 4, kind: input, shape index: {}]
  %s5 = inlined_call_operand.vmem [shape: f32[1,128], index: 5, kind: input, shape index: {}]
  %s6 = inlined_call_operand.hbm [shape: bf16[128,128], index: 6, kind: input, shape index: {}]
  %s7 = inlined_call_operand.vmem [shape: f32[1,128], index: 7, kind: input, shape index: {}]
  %s8 = inlined_call_operand.hbm [shape: f32[1,256], index: 8, kind: output, shape index: {}]
  %s9 = sld [smem:[#allocation0]]
  $region85: #{tpu_custom_call.1} parent=0
    _
  %s11 = ssub.s32 1, %s9
  %s12 = scalar_select 0, %s11, %s9
  $region1: #{tpu_custom_call.1} parent=0
    #allocation2 [shape = 'u8[4096]{0}', space=vmem, size = 0x1000, scoped, tag = 'input window, operand 0']
    #allocation3 [shape = 's32[2]{0}', space=sflag, size = 0x8, scoped, tag = 'scoped memory for tpu_custom_call.1']
    #allocation4 [shape = 's32[2]{0}', space=sflag, size = 0x8, scoped, tag = 'scoped memory for tpu_custom_call.1']
    #allocation5 [shape = 'u8[4096]{0}', space=vmem, size = 0x1000, scoped, tag = 'input window, operand 1']
    #allocation6 [shape = 's32[2]{0}', space=sflag, size = 0x8, scoped, tag = 'scoped memory for tpu_custom_call.1']
    #allocation7 [shape = 'u8[2048]{0}', space=vmem, size = 0x800, scoped, tag = 'input window, operand 2, single buffered']
    #allocation8 [shape = 'u8[32768]{0}', space=vmem, size = 0x8000, scoped, tag = 'input window, operand 4, single buffered']
    #allocation9 [shape = 's32[1]{0}', space=sflag, size = 0x4, scoped, tag = 'scoped memory for tpu_custom_call.1']
    #allocation10 [shape = 'u8[32768]{0}', space=vmem, size = 0x8000, scoped, tag = 'input window, operand 6, single buffered']
    #allocation11 [shape = 'u8[1024]{0}', space=vmem, size = 0x400, scoped, tag = 'output window, operand 0']
    %13 = vsyncpa [#allocation3], 0
    %s14 = scalar_lea.sflag [#allocation3], 1
    %15 = vsyncpa %s14, 0
    %16 = vsyncpa [#allocation6], 0
    %s17 = scalar_lea.sflag [#allocation6], 1
    %18 = vsyncpa %s17, 0
    %19 = vsyncpa [#allocation9], 0
    %20 = vsyncpa [#allocation4], 0
    %s21 = scalar_lea.sflag [#allocation4], 1
    %22 = vsyncpa %s21, 0
    loop: start=0, step=1, limit=4
    $region2: #{tpu_custom_call.1} parent=1 // loop_pre_header
      _
    $region3: #{tpu_custom_call.1} parent=1 // loop_header
      %s24 = sphi 0, %s28
      %p25 = scmp.ge.s32.totalorder %s24, 4
      %s34 = sphi 0, %s36
      %s37 = sphi 0, %s34
      %s38 = sphi 0, %s37
      %s54 = sphi 0, %s38
      %s60 = sphi 0, %s62
      %s63 = sphi 0, %s60
      %s64 = sphi 0, %s63
      %s80 = sphi 0, %s64
      %s84 = sphi 0, %s84
      %s86 = sphi 0, %s84
      %s87 = sphi 0, %s86
      %s101 = sphi 0, %s87
      %s105 = sphi 0, %s105
      %s107 = sphi 0, %s105
      %s108 = sphi 0, %s107
      %s122 = sphi 0, %s108
      %s126 = sphi 0, %s126
      %s128 = sphi 0, %s126
      %s129 = sphi 0, %s128
      %s143 = sphi 0, %s129
      %s147 = sphi 0, %s147
      %s149 = sphi 0, %s147
      %s150 = sphi 0, %s149
      %s164 = sphi 0, %s150
      %s168 = sphi 0, %s168
      %s170 = sphi 0, %s168
      %s171 = sphi 0, %s170
      %s185 = sphi 0, %s171
      %s189 = sphi 0, %s189
      %s191 = sphi 0, %s189
      %s192 = sphi 0, %s191
      %s206 = sphi 0, %s192
      %s212 = sphi 0, %s214
      %s215 = sphi 0, %s212
      %s216 = sphi 0, %s215
      %s232 = sphi 0, %s216
    $region4: #{tpu_custom_call.1} parent=1 // loop_header_branch
      %27 = sbr.rel (%p25) target = $region8
    $region5: #{tpu_custom_call.1} parent=1 // loop_body
      %s29 = ssub.s32 %s24, 1
      %s30 = ssub.s32 %s24, 2
      %s31 = sadd.s32 %s24, 1
      %s32 = ssub.s32 %s24, %s31
      %p33 = scmp.eq.s32.totalorder %s32, 0
      %s35 = sadd.s32 %s34, 1
      %s36 = scalar_select %p33, %s34, %s35
      %p39 = pneg %p33
      %p40 = scmp.eq.s32.totalorder %s24, 1
      %p41 = por %p39, %p40
      %p42 = scmp.ne.s32.totalorder %s34, %s37
      %p43 = scmp.eq.s32.totalorder %s24, 0
      %p44 = por %p42, %p43
      %p45 = scmp.ne.s32.totalorder %s34, %s37
      %p46 = scmp.eq.s32.totalorder %s29, 1
      %p47 = por %p45, %p46
      %p48 = scmp.ne.s32.totalorder %s37, %s38
      %p49 = scmp.eq.s32.totalorder %s29, 0
      %p50 = por %p48, %p49
      %p51 = scmp.ne.s32.totalorder %s37, %s38
      %p52 = scmp.eq.s32.totalorder %s30, 1
      %p53 = por %p51, %p52
      %p55 = scmp.ne.s32.totalorder %s38, %s54
      %p56 = scmp.eq.s32.totalorder %s30, 0
      %p57 = por %p55, %p56
      %s58 = ssub.s32 %s24, %s31
      %p59 = scmp.eq.s32.totalorder %s58, 0
      %s61 = sadd.s32 %s60, 1
      %s62 = scalar_select %p59, %s60, %s61
      %p65 = pneg %p59
      %p66 = scmp.eq.s32.totalorder %s24, 1
      %p67 = por %p65, %p66
      %p68 = scmp.ne.s32.totalorder %s60, %s63
      %p69 = scmp.eq.s32.totalorder %s24, 0
      %p70 = por %p68, %p69
      %p71 = scmp.ne.s32.totalorder %s60, %s63
      %p72 = scmp.eq.s32.totalorder %s29, 1
      %p73 = por %p71, %p72
      %p74 = scmp.ne.s32.totalorder %s63, %s64
      %p75 = scmp.eq.s32.totalorder %s29, 0
      %p76 = por %p74, %p75
      %p77 = scmp.ne.s32.totalorder %s63, %s64
      %p78 = scmp.eq.s32.totalorder %s30, 1
      %p79 = por %p77, %p78
      %p81 = scmp.ne.s32.totalorder %s64, %s80
      %p82 = scmp.eq.s32.totalorder %s30, 0
      %p83 = por %p81, %p82
      %s85 = sadd.s32 %s84, 1
      %p88 = scmp.eq.s32.totalorder %s24, 1
      %p89 = scmp.ne.s32.totalorder %s84, %s86
      %p90 = scmp.eq.s32.totalorder %s24, 0
      %p91 = por %p89, %p90
      %p92 = scmp.ne.s32.totalorder %s84, %s86
      %p93 = scmp.eq.s32.totalorder %s29, 1
      %p94 = por %p92, %p93
      %p95 = scmp.ne.s32.totalorder %s86, %s87
      %p96 = scmp.eq.s32.totalorder %s29, 0
      %p97 = por %p95, %p96
      %p98 = scmp.ne.s32.totalorder %s86, %s87
      %p99 = scmp.eq.s32.totalorder %s30, 1
      %p100 = por %p98, %p99
      %p102 = scmp.ne.s32.totalorder %s87, %s101
      %p103 = scmp.eq.s32.totalorder %s30, 0
      %p104 = por %p102, %p103
      %s106 = sadd.s32 %s105, 1
      %p109 = scmp.eq.s32.totalorder %s24, 1
      %p110 = scmp.ne.s32.totalorder %s105, %s107
      %p111 = scmp.eq.s32.totalorder %s24, 0
      %p112 = por %p110, %p111
      %p113 = scmp.ne.s32.totalorder %s105, %s107
      %p114 = scmp.eq.s32.totalorder %s29, 1
      %p115 = por %p113, %p114
      %p116 = scmp.ne.s32.totalorder %s107, %s108
      %p117 = scmp.eq.s32.totalorder %s29, 0
      %p118 = por %p116, %p117
      %p119 = scmp.ne.s32.totalorder %s107, %s108
      %p120 = scmp.eq.s32.totalorder %s30, 1
      %p121 = por %p119, %p120
      %p123 = scmp.ne.s32.totalorder %s108, %s122
      %p124 = scmp.eq.s32.totalorder %s30, 0
      %p125 = por %p123, %p124
      %s127 = sadd.s32 %s126, 1
      %p130 = scmp.eq.s32.totalorder %s24, 1
      %p131 = scmp.ne.s32.totalorder %s126, %s128
      %p132 = scmp.eq.s32.totalorder %s24, 0
      %p133 = por %p131, %p132
      %p134 = scmp.ne.s32.totalorder %s126, %s128
      %p135 = scmp.eq.s32.totalorder %s29, 1
      %p136 = por %p134, %p135
      %p137 = scmp.ne.s32.totalorder %s128, %s129
      %p138 = scmp.eq.s32.totalorder %s29, 0
      %p139 = por %p137, %p138
      %p140 = scmp.ne.s32.totalorder %s128, %s129
      %p141 = scmp.eq.s32.totalorder %s30, 1
      %p142 = por %p140, %p141
      %p144 = scmp.ne.s32.totalorder %s129, %s143
      %p145 = scmp.eq.s32.totalorder %s30, 0
      %p146 = por %p144, %p145
      %s148 = sadd.s32 %s147, 1
      %p151 = scmp.eq.s32.totalorder %s24, 1
      %p152 = scmp.ne.s32.totalorder %s147, %s149
      %p153 = scmp.eq.s32.totalorder %s24, 0
      %p154 = por %p152, %p153
      %p155 = scmp.ne.s32.totalorder %s147, %s149
      %p156 = scmp.eq.s32.totalorder %s29, 1
      %p157 = por %p155, %p156
      %p158 = scmp.ne.s32.totalorder %s149, %s150
      %p159 = scmp.eq.s32.totalorder %s29, 0
      %p160 = por %p158, %p159
      %p161 = scmp.ne.s32.totalorder %s149, %s150
      %p162 = scmp.eq.s32.totalorder %s30, 1
      %p163 = por %p161, %p162
      %p165 = scmp.ne.s32.totalorder %s150, %s164
      %p166 = scmp.eq.s32.totalorder %s30, 0
      %p167 = por %p165, %p166
      %s169 = sadd.s32 %s168, 1
      %p172 = scmp.eq.s32.totalorder %s24, 1
      %p173 = scmp.ne.s32.totalorder %s168, %s170
      %p174 = scmp.eq.s32.totalorder %s24, 0
      %p175 = por %p173, %p174
      %p176 = scmp.ne.s32.totalorder %s168, %s170
      %p177 = scmp.eq.s32.totalorder %s29, 1
      %p178 = por %p176, %p177
      %p179 = scmp.ne.s32.totalorder %s170, %s171
      %p180 = scmp.eq.s32.totalorder %s29, 0
      %p181 = por %p179, %p180
      %p182 = scmp.ne.s32.totalorder %s170, %s171
      %p183 = scmp.eq.s32.totalorder %s30, 1
      %p184 = por %p182, %p183
      %p186 = scmp.ne.s32.totalorder %s171, %s185
      %p187 = scmp.eq.s32.totalorder %s30, 0
      %p188 = por %p186, %p187
      %s190 = sadd.s32 %s189, 1
      %p193 = scmp.eq.s32.totalorder %s24, 1
      %p194 = scmp.ne.s32.totalorder %s189, %s191
      %p195 = scmp.eq.s32.totalorder %s24, 0
      %p196 = por %p194, %p195
      %p197 = scmp.ne.s32.totalorder %s189, %s191
      %p198 = scmp.eq.s32.totalorder %s29, 1
      %p199 = por %p197, %p198
      %p200 = scmp.ne.s32.totalorder %s191, %s192
      %p201 = scmp.eq.s32.totalorder %s29, 0
      %p202 = por %p200, %p201
      %p203 = scmp.ne.s32.totalorder %s191, %s192
      %p204 = scmp.eq.s32.totalorder %s30, 1
      %p205 = por %p203, %p204
      %p207 = scmp.ne.s32.totalorder %s192, %s206
      %p208 = scmp.eq.s32.totalorder %s30, 0
      %p209 = por %p207, %p208
      %s210 = ssub.s32 %s24, %s31
      %p211 = scmp.eq.s32.totalorder %s210, 0
      %s213 = sadd.s32 %s212, 1
      %s214 = scalar_select %p211, %s212, %s213
      %p217 = pneg %p211
      %p218 = scmp.eq.s32.totalorder %s24, 1
      %p219 = por %p217, %p218
      %p220 = scmp.ne.s32.totalorder %s212, %s215
      %p221 = scmp.eq.s32.totalorder %s24, 0
      %p222 = por %p220, %p221
      %p223 = scmp.ne.s32.totalorder %s212, %s215
      %p224 = scmp.eq.s32.totalorder %s29, 1
      %p225 = por %p223, %p224
      %p226 = scmp.ne.s32.totalorder %s215, %s216
      %p227 = scmp.eq.s32.totalorder %s29, 0
      %p228 = por %p226, %p227
      %p229 = scmp.ne.s32.totalorder %s215, %s216
      %p230 = scmp.eq.s32.totalorder %s30, 1
      %p231 = por %p229, %p230
      %p233 = scmp.ne.s32.totalorder %s216, %s232
      %p234 = scmp.eq.s32.totalorder %s30, 0
      %p235 = por %p233, %p234
      %p236 = scmp.le.s32.totalorder 1, %s24
      %p237 = scmp.lt.s32.totalorder %s24, 3
      %p238 = pnand %p236, %p237
      %p239 = pneg %p238
      // Predicated region
      $region9: #{tpu_custom_call.1} parent=5 // pred_check
        _
      $region10: #{tpu_custom_call.1} parent=5 // pred_check_branch
        %241 = sbr.rel (%p238) target = $region12
      $region11: #{tpu_custom_call.1} parent=5 // pred_region
        %s242 = ssub.s32 %s24, 1
        // Predicated region
        $region13: #{tpu_custom_call.1} parent=11 // pred_check
          %p243 = pneg %p97
        $region14: #{tpu_custom_call.1} parent=11 // pred_check_branch
          %245 = sbr.rel (%p243) target = $region16
        $region15: #{tpu_custom_call.1} parent=11 // pred_region
          %247 = vsyncadd [#allocation6], 0
          %s249 = sshll.u32 %s2, 4
          %s250 = int_to_ptr.hbm [resolvable:$true] %s249
          %s251 = sshll.u32 [#allocation7], 4
          %s252 = int_to_ptr.vmem [resolvable:$true] %s251
          %254 = dma.hbm_to_vmem [thread:$0]  %s250, 64, %s252, [#allocation6]
        $region16: #{tpu_custom_call.1} parent=11 // pred_fallthru
          _
        // Predicated region
        $region17: #{tpu_custom_call.1} parent=11 // pred_check
          %p255 = pneg %p118
        $region18: #{tpu_custom_call.1} parent=11 // pred_check_branch
          %257 = sbr.rel (%p255) target = $region20
        $region19: #{tpu_custom_call.1} parent=11 // pred_region
          _
        $region20: #{tpu_custom_call.1} parent=11 // pred_fallthru
          _
        // Predicated region
        $region21: #{tpu_custom_call.1} parent=11 // pred_check
          %p258 = pneg %p139
        $region22: #{tpu_custom_call.1} parent=11 // pred_check_branch
          %260 = sbr.rel (%p258) target = $region24
        $region23: #{tpu_custom_call.1} parent=11 // pred_region
          %262 = vsyncadd [#allocation9], 0
          %s263 = sshll.u32 %s4, 4
          %s264 = int_to_ptr.hbm [resolvable:$true] %s263
          %s265 = sshll.u32 [#allocation8], 4
          %s266 = int_to_ptr.vmem [resolvable:$true] %s265
          %271 = dma.hbm_to_vmem [thread:$0]  %s264, 1024, %s266, [#allocation9], 64, 64, 4
        $region24: #{tpu_custom_call.1} parent=11 // pred_fallthru
          _
        // Predicated region
        $region25: #{tpu_custom_call.1} parent=11 // pred_check
          %p272 = pneg %p160
        $region26: #{tpu_custom_call.1} parent=11 // pred_check_branch
          %274 = sbr.rel (%p272) target = $region28
        $region27: #{tpu_custom_call.1} parent=11 // pred_region
          _
        $region28: #{tpu_custom_call.1} parent=11 // pred_fallthru
          _
        // Predicated region
        $region29: #{tpu_custom_call.1} parent=11 // pred_check
          %p275 = pneg %p181
        $region30: #{tpu_custom_call.1} parent=11 // pred_check_branch
          %277 = sbr.rel (%p275) target = $region32
        $region31: #{tpu_custom_call.1} parent=11 // pred_region
          %279 = vsyncadd [#allocation9], 0
          %s280 = sshll.u32 %s6, 4
          %s281 = int_to_ptr.hbm [resolvable:$true] %s280
          %s282 = sshll.u32 [#allocation10], 4
          %s283 = int_to_ptr.vmem [resolvable:$true] %s282
          %288 = dma.hbm_to_vmem [thread:$0]  %s281, 1024, %s283, [#allocation9], 64, 64, 4
        $region32: #{tpu_custom_call.1} parent=11 // pred_fallthru
          _
        // Predicated region
        $region33: #{tpu_custom_call.1} parent=11 // pred_check
          %p289 = pneg %p202
        $region34: #{tpu_custom_call.1} parent=11 // pred_check_branch
          %291 = sbr.rel (%p289) target = $region36
        $region35: #{tpu_custom_call.1} parent=11 // pred_region
          _
        $region36: #{tpu_custom_call.1} parent=11 // pred_fallthru
          _
      $region12: #{tpu_custom_call.1} parent=5 // pred_fallthru
        _
      %p292 = scmp.lt.s32.totalorder %s24, 2
      // Predicated region
      $region37: #{tpu_custom_call.1} parent=5 // pred_check
        %p293 = pneg %p292
      $region38: #{tpu_custom_call.1} parent=5 // pred_check_branch
        %295 = sbr.rel (%p293) target = $region40
      $region39: #{tpu_custom_call.1} parent=5 // pred_region
        // Predicated region
        $region41: #{tpu_custom_call.1} parent=39 // pred_check
          %p296 = pneg %p44
        $region42: #{tpu_custom_call.1} parent=39 // pred_check_branch
          %298 = sbr.rel (%p296) target = $region44
        $region43: #{tpu_custom_call.1} parent=39 // pred_region
          %s299 = sand.u32 %s34, 1
          %s300 = scalar_lea.sflag [#allocation3], %s299
          %s301 = sand.u32 %s34, 1
          %s302 = smul.addr %s301, 4
          %s303 = scalar_lea.vmem [#allocation2], %s302
          %305 = vsyncadd %s300, 0
          %s306 = smul.addr %s24, 4
          %s307 = scalar_lea.hbm %s0, %s306
          %s309 = sshll.u32 %s307, 4
          %s310 = int_to_ptr.hbm [resolvable:$true] %s309
          %s311 = sshll.u32 %s303, 4
          %s312 = int_to_ptr.vmem [resolvable:$true] %s311
          %314 = dma.hbm_to_vmem [thread:$0]  %s310, 64, %s312, %s300
        $region44: #{tpu_custom_call.1} parent=39 // pred_fallthru
          _
        // Predicated region
        $region45: #{tpu_custom_call.1} parent=39 // pred_check
          %p315 = pneg %p70
        $region46: #{tpu_custom_call.1} parent=39 // pred_check_branch
          %317 = sbr.rel (%p315) target = $region48
        $region47: #{tpu_custom_call.1} parent=39 // pred_region
          %s318 = sand.u32 %s24, 1
          %s319 = scalar_lea.sflag [#allocation6], %s318
          %s320 = sand.u32 %s60, 1
          %s321 = smul.addr %s320, 4
          %s322 = scalar_lea.vmem [#allocation5], %s321
          %324 = vsyncadd %s319, 0
          %s325 = smul.addr %s24, 4
          %s326 = scalar_lea.hbm %s1, %s325
          %s328 = sshll.u32 %s326, 4
          %s329 = int_to_ptr.hbm [resolvable:$true] %s328
          %s330 = sshll.u32 %s322, 4
          %s331 = int_to_ptr.vmem [resolvable:$true] %s330
          %333 = dma.hbm_to_vmem [thread:$0]  %s329, 64, %s331, %s319
        $region48: #{tpu_custom_call.1} parent=39 // pred_fallthru
          _
      $region40: #{tpu_custom_call.1} parent=5 // pred_fallthru
        _
      %p334 = scmp.le.s32.totalorder 1, %s24
      %p335 = scmp.lt.s32.totalorder %s24, 3
      %p336 = pnand %p334, %p335
      %p337 = pneg %p336
      // Predicated region
      $region49: #{tpu_custom_call.1} parent=5 // pred_check
        _
      $region50: #{tpu_custom_call.1} parent=5 // pred_check_branch
        %339 = sbr.rel (%p336) target = $region52
      $region51: #{tpu_custom_call.1} parent=5 // pred_region
        %s340 = ssub.s32 %s24, 1
        %s341 = sand.u32 %s37, 1
        %s342 = scalar_lea.sflag [#allocation3], %s341
        %s343 = sand.u32 %s37, 1
        %s344 = smul.addr %s343, 4
        %s345 = scalar_lea.vmem [#allocation2], %s344
        // Predicated region
        $region53: #{tpu_custom_call.1} parent=51 // pred_check
          %p346 = pneg %p50
        $region54: #{tpu_custom_call.1} parent=51 // pred_check_branch
          %348 = sbr.rel (%p346) target = $region56
        $region55: #{tpu_custom_call.1} parent=51 // pred_region
          %350 = dma.done %s342, 64
        $region56: #{tpu_custom_call.1} parent=51 // pred_fallthru
          _
        %s351 = sand.u32 %s29, 1
        %s352 = scalar_lea.sflag [#allocation6], %s351
        %s353 = sand.u32 %s63, 1
        %s354 = smul.addr %s353, 4
        %s355 = scalar_lea.vmem [#allocation5], %s354
        // Predicated region
        $region57: #{tpu_custom_call.1} parent=51 // pred_check
          %p356 = pneg %p76
        $region58: #{tpu_custom_call.1} parent=51 // pred_check_branch
          %358 = sbr.rel (%p356) target = $region60
        $region59: #{tpu_custom_call.1} parent=51 // pred_region
          %360 = dma.done %s352, 64
        $region60: #{tpu_custom_call.1} parent=51 // pred_fallthru
          _
        // Predicated region
        $region61: #{tpu_custom_call.1} parent=51 // pred_check
          %p361 = pneg %p97
        $region62: #{tpu_custom_call.1} parent=51 // pred_check_branch
          %363 = sbr.rel (%p361) target = $region64
        $region63: #{tpu_custom_call.1} parent=51 // pred_region
          %365 = dma.done [#allocation6], 64
        $region64: #{tpu_custom_call.1} parent=51 // pred_fallthru
          _
        // Predicated region
        $region65: #{tpu_custom_call.1} parent=51 // pred_check
          %p366 = pneg %p139
        $region66: #{tpu_custom_call.1} parent=51 // pred_check_branch
          %368 = sbr.rel (%p366) target = $region68
        $region67: #{tpu_custom_call.1} parent=51 // pred_region
          %370 = dma.done [#allocation9], 1024
        $region68: #{tpu_custom_call.1} parent=51 // pred_fallthru
          _
        // Predicated region
        $region69: #{tpu_custom_call.1} parent=51 // pred_check
          %p371 = pneg %p181
        $region70: #{tpu_custom_call.1} parent=51 // pred_check_branch
          %373 = sbr.rel (%p371) target = $region72
        $region71: #{tpu_custom_call.1} parent=51 // pred_region
          %375 = dma.done [#allocation9], 1024
        $region72: #{tpu_custom_call.1} parent=51 // pred_fallthru
          _
        %s376 = sand.u32 %s37, 1
        %s377 = scalar_lea.sflag [#allocation3], %s376
        %s378 = sand.u32 %s37, 1
        %s379 = smul.addr %s378, 4
        %s380 = scalar_lea.vmem [#allocation2], %s379
        %p381 = pneg %p50
        %p382 = pneg %p47
        %s383 = sand.u32 %s29, 1
        %s384 = scalar_lea.sflag [#allocation6], %s383
        %s385 = sand.u32 %s63, 1
        %s386 = smul.addr %s385, 4
        %s387 = scalar_lea.vmem [#allocation5], %s386
        %p388 = pneg %p76
        %p389 = pneg %p73
        %p390 = pneg %p97
        %p391 = pneg %p94
        %p392 = pneg %p118
        %p393 = pneg %p115
        %p394 = pneg %p139
        %p395 = pneg %p136
        %p396 = pneg %p160
        %p397 = pneg %p157
        %p398 = pneg %p181
        %p399 = pneg %p178
        %p400 = pneg %p202
        %p401 = pneg %p199
        %p402 = pneg %p228
        %p403 = pneg %p225
        %s404 = sand.u32 %s215, 1
        %s405 = scalar_lea.sflag [#allocation4], %s404
        %s406 = sand.u32 %s215, 1
        %s407 = scalar_lea.vmem [#allocation11], %s406
        %v409 = vld [vmem:[%s345] sm:$0xf]
        %v410 = vld [vmem:[%s355] sm:$0xf]
        %v411 = vld [vmem:[#allocation7] sm:$0xf]
        %v412 = vld [vmem:[#allocation8] sm:$0xf]
        %v413 = vld [vmem:[#allocation8 + $0x4] sm:$0xf]
        %v414 = vld [vmem:[#allocation8 + $0x8] sm:$0xf]
        %v415 = vld [vmem:[#allocation8 + $0xc] sm:$0xf]
        %v416 = vld [vmem:[#allocation8 + $0x10] sm:$0xf]
        %v417 = vld [vmem:[#allocation8 + $0x14] sm:$0xf]
        %v418 = vld [vmem:[#allocation8 + $0x18] sm:$0xf]
        %v419 = vld [vmem:[#allocation8 + $0x1c] sm:$0xf]
        %v420 = vld [vmem:[#allocation8 + $0x20] sm:$0xf]
        %v421 = vld [vmem:[#allocation8 + $0x24] sm:$0xf]
        %v422 = vld [vmem:[#allocation8 + $0x28] sm:$0xf]
        %v423 = vld [vmem:[#allocation8 + $0x2c] sm:$0xf]
        %v424 = vld [vmem:[#allocation8 + $0x30] sm:$0xf]
        %v425 = vld [vmem:[#allocation8 + $0x34] sm:$0xf]
        %v426 = vld [vmem:[#allocation8 + $0x38] sm:$0xf]
        %v427 = vld [vmem:[#allocation8 + $0x3c] sm:$0xf]
        %v428 = vld [vmem:[#allocation10] sm:$0xf]
        %v429 = vld [vmem:[#allocation10 + $0x4] sm:$0xf]
        %v430 = vld [vmem:[#allocation10 + $0x8] sm:$0xf]
        %v431 = vld [vmem:[#allocation10 + $0xc] sm:$0xf]
        %v432 = vld [vmem:[#allocation10 + $0x10] sm:$0xf]
        %v433 = vld [vmem:[#allocation10 + $0x14] sm:$0xf]
        %v434 = vld [vmem:[#allocation10 + $0x18] sm:$0xf]
        %v435 = vld [vmem:[#allocation10 + $0x1c] sm:$0xf]
        %v436 = vld [vmem:[#allocation10 + $0x20] sm:$0xf]
        %v437 = vld [vmem:[#allocation10 + $0x24] sm:$0xf]
        %v438 = vld [vmem:[#allocation10 + $0x28] sm:$0xf]
        %v439 = vld [vmem:[#allocation10 + $0x2c] sm:$0xf]
        %v440 = vld [vmem:[#allocation10 + $0x30] sm:$0xf]
        %v441 = vld [vmem:[#allocation10 + $0x34] sm:$0xf]
        %v442 = vld [vmem:[#allocation10 + $0x38] sm:$0xf]
        %v443 = vld [vmem:[#allocation10 + $0x3c] sm:$0xf]
        %v444 = vld [vmem:[%s3] sm:$0x1]
        %v446 = vperm.slane %v444, 0
        %vm448 = vcmask 64512
        %v450 = vsel %vm448, %v409, 0
        %vm452 = vcmask 1043456
        %v454 = vsel %vm452, %v411, 0
        %456 = vmatpush.bf16.msra.mxu0 0
        %457 = vmatpush.bf16.msra.mxu0 0
        %458 = vmatpush.bf16.msra.mxu0 0
        %459 = vmatpush.bf16.msra.mxu0 0
        %460 = vmatpush.bf16.msra.mxu0 0
        %461 = vmatpush.bf16.msra.mxu0 0
        %462 = vmatpush.bf16.msra.mxu0 0
        %463 = vmatpush.bf16.msra.mxu0 %v454
        %464 = vmatmul.bf16.gmra.mxu0 %v450
        %v465 = vpop.f32.mrf.mxu0
        %v466 = vadd.f32 %v446, %v465
        %v467 = vpop.f32.mrf.mxu0
        %468 = vdwg.mxu0
        %v469 = vmax.f32 %v466, 0.0
        %v470 = vld [vmem:[%s5] sm:$0x1]
        %v472 = vperm.slane %v470, 0
        %v474 = vadd.f32 %v466, %v472
        %v475 = vpack.c.bf16 %v469, %v469
        %v477 = vsel %vm448, %v410, 0
        %v480 = vsel %vm452, %v475, 0
        %482 = vmatpush.bf16.msra.mxu0 0
        %483 = vmatpush.bf16.msra.mxu0 0
        %484 = vmatpush.bf16.msra.mxu0 0
        %485 = vmatpush.bf16.msra.mxu0 0
        %486 = vmatpush.bf16.msra.mxu0 0
        %487 = vmatpush.bf16.msra.mxu0 0
        %488 = vmatpush.bf16.msra.mxu0 0
        %489 = vmatpush.bf16.msra.mxu0 %v480
        %490 = vmatmul.bf16.gmra.mxu0 %v477
        %v491 = vpop.f32.mrf.mxu0
        %v492 = vadd.f32 0.0, %v491
        %v493 = vpop.f32.mrf.mxu0
        %494 = vdwg.mxu0
        %v495 = vpack.c.bf16 %v492, %v492
        %v512 = vunpack.c.l.b16 %v412
        %v513 = vunpack.c.l.b16 %v413
        %v514 = vunpack.c.l.b16 %v414
        %v515 = vunpack.c.l.b16 %v415
        %v516 = vunpack.c.l.b16 %v416
        %v517 = vunpack.c.l.b16 %v417
        %v518 = vunpack.c.l.b16 %v418
        %v519 = vunpack.c.l.b16 %v419
        %v520 = vunpack.c.l.b16 %v420
        %v521 = vunpack.c.l.b16 %v421
        %v522 = vunpack.c.l.b16 %v422
        %v523 = vunpack.c.l.b16 %v423
        %v524 = vunpack.c.l.b16 %v424
        %v525 = vunpack.c.l.b16 %v425
        %v526 = vunpack.c.l.b16 %v426
        %v527 = vunpack.c.l.b16 %v427
        %v528 = vpack.c.b16 %v513, %v512
        %v529 = vpack.c.b16 %v515, %v514
        %v530 = vpack.c.b16 %v517, %v516
        %v531 = vpack.c.b16 %v519, %v518
        %v532 = vpack.c.b16 %v521, %v520
        %v533 = vpack.c.b16 %v523, %v522
        %v534 = vpack.c.b16 %v525, %v524
        %v535 = vpack.c.b16 %v527, %v526
        %544 = vmatpush.bf16.msra.mxu0 %v535
        %545 = vmatpush.bf16.msra.mxu0 %v534
        %546 = vmatpush.bf16.msra.mxu0 %v533
        %547 = vmatpush.bf16.msra.mxu0 %v532
        %548 = vmatpush.bf16.msra.mxu0 %v531
        %549 = vmatpush.bf16.msra.mxu0 %v530
        %550 = vmatpush.bf16.msra.mxu0 %v529
        %551 = vmatpush.bf16.msra.mxu0 %v528
        %552 = vmatmul.bf16.gmra.mxu0 %v495
        %v553 = vpop.f32.mrf.mxu0
        %v554 = vadd.f32 %v474, %v553
        %v555 = vpop.f32.mrf.mxu0
        %556 = vdwg.mxu0
        %v557 = vmax.f32 %v554, 0.0
        %v558 = vpack.c.bf16 %v557, %v557
        %v560 = vsel %vm452, %v558, 0
        %562 = vmatpush.bf16.msra.mxu0 0
        %563 = vmatpush.bf16.msra.mxu0 0
        %564 = vmatpush.bf16.msra.mxu0 0
        %565 = vmatpush.bf16.msra.mxu0 0
        %566 = vmatpush.bf16.msra.mxu0 0
        %567 = vmatpush.bf16.msra.mxu0 0
        %568 = vmatpush.bf16.msra.mxu0 0
        %569 = vmatpush.bf16.msra.mxu0 %v560
        %570 = vmatmul.bf16.gmra.mxu0 %v477
        %v571 = vpop.f32.mrf.mxu0
        %v572 = vadd.f32 0.0, %v571
        %v573 = vpop.f32.mrf.mxu0
        %574 = vdwg.mxu0
        %v575 = vpack.c.bf16 %v572, %v572
        %576 = vmatpush.bf16.msra.mxu0 %v535
        %577 = vmatpush.bf16.msra.mxu0 %v534
        %578 = vmatpush.bf16.msra.mxu0 %v533
        %579 = vmatpush.bf16.msra.mxu0 %v532
        %580 = vmatpush.bf16.msra.mxu0 %v531
        %581 = vmatpush.bf16.msra.mxu0 %v530
        %582 = vmatpush.bf16.msra.mxu0 %v529
        %583 = vmatpush.bf16.msra.mxu0 %v528
        %584 = vmatmul.bf16.gmra.mxu0 %v575
        %v585 = vpop.f32.mrf.mxu0
        %v586 = vadd.f32 %v474, %v585
        %v587 = vpop.f32.mrf.mxu0
        %588 = vdwg.mxu0
        %v589 = vmax.f32 %v586, 0.0
        %v590 = vpack.c.bf16 %v589, %v589
        %v592 = vsel %vm452, %v590, 0
        %594 = vmatpush.bf16.msra.mxu0 0
        %595 = vmatpush.bf16.msra.mxu0 0
        %596 = vmatpush.bf16.msra.mxu0 0
        %597 = vmatpush.bf16.msra.mxu0 0
        %598 = vmatpush.bf16.msra.mxu0 0
        %599 = vmatpush.bf16.msra.mxu0 0
        %600 = vmatpush.bf16.msra.mxu0 0
        %601 = vmatpush.bf16.msra.mxu0 %v592
        %602 = vmatmul.bf16.gmra.mxu0 %v477
        %v603 = vpop.f32.mrf.mxu0
        %v604 = vadd.f32 0.0, %v603
        %v605 = vpop.f32.mrf.mxu0
        %606 = vdwg.mxu0
        %v607 = vpack.c.bf16 %v604, %v604
        %608 = vmatpush.bf16.msra.mxu0 %v535
        %609 = vmatpush.bf16.msra.mxu0 %v534
        %610 = vmatpush.bf16.msra.mxu0 %v533
        %611 = vmatpush.bf16.msra.mxu0 %v532
        %612 = vmatpush.bf16.msra.mxu0 %v531
        %613 = vmatpush.bf16.msra.mxu0 %v530
        %614 = vmatpush.bf16.msra.mxu0 %v529
        %615 = vmatpush.bf16.msra.mxu0 %v528
        %616 = vmatmul.bf16.gmra.mxu0 %v607
        %v617 = vpop.f32.mrf.mxu0
        %v618 = vadd.f32 %v474, %v617
        %v619 = vpop.f32.mrf.mxu0
        %620 = vdwg.mxu0
        %v621 = vmax.f32 %v618, 0.0
        %v622 = vpack.c.bf16 %v621, %v621
        %v623 = vld [vmem:[%s7] sm:$0x1]
        %v625 = vperm.slane %v623, 0
        %v643 = vunpack.c.l.b16 %v428
        %v644 = vunpack.c.l.b16 %v429
        %v645 = vunpack.c.l.b16 %v430
        %v646 = vunpack.c.l.b16 %v431
        %v647 = vunpack.c.l.b16 %v432
        %v648 = vunpack.c.l.b16 %v433
        %v649 = vunpack.c.l.b16 %v434
        %v650 = vunpack.c.l.b16 %v435
        %v651 = vunpack.c.l.b16 %v436
        %v652 = vunpack.c.l.b16 %v437
        %v653 = vunpack.c.l.b16 %v438
        %v654 = vunpack.c.l.b16 %v439
        %v655 = vunpack.c.l.b16 %v440
        %v656 = vunpack.c.l.b16 %v441
        %v657 = vunpack.c.l.b16 %v442
        %v658 = vunpack.c.l.b16 %v443
        %v659 = vpack.c.b16 %v644, %v643
        %v660 = vpack.c.b16 %v646, %v645
        %v661 = vpack.c.b16 %v648, %v647
        %v662 = vpack.c.b16 %v650, %v649
        %v663 = vpack.c.b16 %v652, %v651
        %v664 = vpack.c.b16 %v654, %v653
        %v665 = vpack.c.b16 %v656, %v655
        %v666 = vpack.c.b16 %v658, %v657
        %675 = vmatpush.bf16.msra.mxu0 %v666
        %676 = vmatpush.bf16.msra.mxu0 %v665
        %677 = vmatpush.bf16.msra.mxu0 %v664
        %678 = vmatpush.bf16.msra.mxu0 %v663
        %679 = vmatpush.bf16.msra.mxu0 %v662
        %680 = vmatpush.bf16.msra.mxu0 %v661
        %681 = vmatpush.bf16.msra.mxu0 %v660
        %682 = vmatpush.bf16.msra.mxu0 %v659
        %683 = vmatmul.bf16.gmra.mxu0 %v622
        %v684 = vpop.f32.mrf.mxu0
        %v685 = vadd.f32 %v625, %v684
        %v686 = vpop.f32.mrf.mxu0
        %687 = vdwg.mxu0
        %v688 = vmax.f32 %v685, 0.0
        %v689 = vrot.slane %v688, 4
        %v690 = vadd.f32 %v688, %v689
        %v691 = vrot.slane %v690, 2
        %v692 = vadd.f32 %v690, %v691
        %v693 = vrot.slane %v692, 1
        %v694 = vadd.f32 %v692, %v693
        %v695 = vmax.f32 %v694, 0.0
        %696 = vst [vmem:[%s407] sm:$0x1] %v695
        %s697 = sand.u32 %s215, 1
        %s698 = scalar_lea.sflag [#allocation4], %s697
        %s699 = sand.u32 %s215, 1
        %s700 = scalar_lea.vmem [#allocation11], %s699
        // Predicated region
        $region73: #{tpu_custom_call.1} parent=51 // pred_check
          %p701 = pneg %p225
        $region74: #{tpu_custom_call.1} parent=51 // pred_check_branch
          %703 = sbr.rel (%p701) target = $region76
        $region75: #{tpu_custom_call.1} parent=51 // pred_region
          %705 = vsyncadd %s698, 0
          %s706 = scalar_lea.hbm %s8, %s29
          %s708 = sshll.u32 %s700, 4
          %s709 = int_to_ptr.vmem [resolvable:$true] %s708
          %s710 = sshll.u32 %s706, 4
          %s711 = int_to_ptr.hbm [resolvable:$true] %s710
          %713 = dma.vmem_to_hbm [thread:$0]  %s709, 16, %s711, %s698
        $region76: #{tpu_custom_call.1} parent=51 // pred_fallthru
          _
      $region52: #{tpu_custom_call.1} parent=5 // pred_fallthru
        _
      %p714 = scmp.le.s32.totalorder 2, %s24
      // Predicated region
      $region77: #{tpu_custom_call.1} parent=5 // pred_check
        %p715 = pneg %p714
      $region78: #{tpu_custom_call.1} parent=5 // pred_check_branch
        %717 = sbr.rel (%p715) target = $region80
      $region79: #{tpu_custom_call.1} parent=5 // pred_region
        %s718 = ssub.s32 %s24, 2
        // Predicated region
        $region81: #{tpu_custom_call.1} parent=79 // pred_check
          %p719 = pneg %p231
        $region82: #{tpu_custom_call.1} parent=79 // pred_check_branch
          %721 = sbr.rel (%p719) target = $region84
        $region83: #{tpu_custom_call.1} parent=79 // pred_region
          %s722 = sand.u32 %s216, 1
          %s723 = scalar_lea.sflag [#allocation4], %s722
          %s724 = sand.u32 %s216, 1
          %s725 = scalar_lea.vmem [#allocation11], %s724
          %727 = dma.done %s723, 16
        $region84: #{tpu_custom_call.1} parent=79 // pred_fallthru
          _
      $region80: #{tpu_custom_call.1} parent=5 // pred_fallthru
        _
    $region6: #{tpu_custom_call.1} parent=1 // loop_footer
      %s28 = sadd.s32 1, %s24
    $region7: #{tpu_custom_call.1} parent=1 // loop_footer_branch
      %23 = sbr.rel target = $region3
    $region8: #{tpu_custom_call.1} parent=1 // loop_exit
      _
    %728 = vsyncpa [#allocation3], 1
    %s729 = scalar_lea.sflag [#allocation3], 1
    %730 = vsyncpa %s729, 1
    %731 = vsyncpa [#allocation6], 1
    %s732 = scalar_lea.sflag [#allocation6], 1
    %733 = vsyncpa %s732, 1
    %734 = vsyncpa [#allocation9], 1
    %735 = vsyncpa [#allocation4], 1
    %s736 = scalar_lea.sflag [#allocation4], 1
    %737 = vsyncpa %s736, 1

</llo_original>
